<compile_context>
chip_gen: v7x
topology: tpu7x:2x2x1
jax: 0.10.0
libtpu: 0.0.40
codegen_flags: <defaults>
</compile_context>

<pallas_src>
import functools

import jax
import jax.numpy as jnp
from jax.experimental import pallas as pl
from jax.experimental.pallas import tpu as pltpu

SELU_ALPHA = 1.6732632423543772
SELU_SCALE = 1.0507009873554805
HIDDEN = 256


def _selu(x):
    # SELU(x) = scale * (x if x > 0 else alpha * (exp(x) - 1)); clamp the exp argument
    # so the EUP never emits inf on the branch jnp.where discards.  Runs in x.dtype
    # (f32 everywhere on v5e, bf16 for layers 1-2 on v6e/v7x).
    neg = SELU_ALPHA * (jnp.exp(jnp.minimum(x, 0.0)) - 1.0)
    return SELU_SCALE * jnp.where(x > 0, x, neg)


def snn_kernel(x_ref, w1_ref, b1_ref, w2_ref, b2_ref, w3_ref, b3_ref, o_ref, *,
               act_dtype):
    # x_ref: (TM, d_pad) f32 (cast to the matmul dtype here, in VMEM, not in the wrapper)
    # w*_ref: compute_dtype (bf16), b*_ref: f32, o_ref: (TM, d_out) f32.
    cd = w1_ref.dtype
    x = x_ref[...].astype(cd)

    h1 = jnp.dot(x, w1_ref[...], preferred_element_type=jnp.float32)
    h1 = _selu((h1 + b1_ref[...]).astype(act_dtype))          # (TM, 256)

    h2 = jnp.dot(h1.astype(cd), w2_ref[...], preferred_element_type=jnp.float32)
    h2 = _selu((h2 + b2_ref[...]).astype(act_dtype))          # (TM, 256)

    h3 = jnp.dot(h2.astype(cd), w3_ref[...], preferred_element_type=jnp.float32)
    o_ref[...] = _selu(h3 + b3_ref[...]).astype(o_ref.dtype)  # final SELU in f32


def _round_up(x, m):
    return ((x + m - 1) // m) * m


def _device_kind():
    try:
        return jax.devices()[0].device_kind.lower()
    except Exception:
        return ""


def _is_v7x(kind):
    return ("v7" in kind) or ("7x" in kind)


def _default_act_dtype():
    """bf16 SELU for layers 1-2 on v6e/v7x (bf16 VPU/EUP); f32 otherwise (v5e etc.)."""
    kind = _device_kind()
    if _is_v7x(kind) or ("v6" in kind):
        return jnp.bfloat16
    return jnp.float32


def _physical_vmem_bytes(is_v7x):
    try:
        return int(pltpu.get_tpu_info().vmem_capacity_bytes)
    except Exception:
        return (64 << 20) if is_v7x else (128 << 20)


def snn_forward(x, params, *, tile_m=None, compute_dtype=jnp.bfloat16, act_dtype=None):
    """x: (B, d) float32.  params: dict of w1,b1,w2,b2,w3,b3 (transposed layout, f32)."""
    B, d = x.shape
    H = params["w1"].shape[1]
    d_out = params["w3"].shape[1]

    kind = _device_kind()
    is_v7x = _is_v7x(kind)
    if act_dtype is None:
        act_dtype = _default_act_dtype()

    wbytes = jnp.dtype(compute_dtype).itemsize
    out_dtype = jnp.float32
    obytes = jnp.dtype(out_dtype).itemsize

    # Pad the feature dim to a lane multiple once (zero columns x zero w1 rows add 0).
    d_pad = _round_up(d, 128)

    # ---- VMEM budget & batch-tile selection ---------------------------------------
    physical_vmem = _physical_vmem_bytes(is_v7x)
    vmem_cap = physical_vmem - (16 << 20)       # headroom for Mosaic scratch / sems

    weight_bytes = (d_pad * H + H * H + H * d_out) * wbytes + (2 * H + d_out) * 4
    resident = 2 * weight_bytes                 # conservative: assume double-buffered
    # Per batch-row cost: double-buffered f32 x / f32 out tiles + hidden temporaries.
    per_row = (2 * d_pad * 4 + 2 * d_out * obytes
               + 3 * H * 4 + 2 * H * wbytes + d_out * 4)

    budget = max(vmem_cap - resident - (2 << 20), per_row * 16)
    tm_vmem = max(16, (budget // per_row) // 16 * 16)

    if tile_m is not None:
        tm = tile_m
    else:
        # Big tiles amortize per-grid-step overhead; never pad a small batch up.
        tm = min(1024, tm_vmem, _round_up(B, 16))
        # v7x has two TensorCores: keep >= 2 parallel grid steps for non-trivial B.
        if is_v7x and B >= 256 and _round_up(B, tm) // tm < 2:
            tm = _round_up((B + 1) // 2, 16)
    tm = max(16, _round_up(tm, 16))
    b_pad = _round_up(B, tm)
    grid = (b_pad // tm,)

    est_vmem = resident + tm * per_row
    # Always set the limit explicitly (scoped default is 16 MiB on v5e, 32 MiB on v6e).
    vmem_limit = int(min(vmem_cap, max(est_vmem + est_vmem // 4 + (1 << 20), 32 << 20)))
    # TODO(synk): if resident weights alone approach vmem_cap (very large d on v7x),
    # add a K-tiling grid axis over d for layer 1 with an f32 VMEM accumulator and
    # pl.when init/finalize.

    # ---- operand prep (no wrapper-side cast pass over x; pads only when needed) ----
    x_p = x.astype(jnp.float32)
    if d_pad != d or b_pad != B:
        x_p = jnp.pad(x_p, ((0, b_pad - B), (0, d_pad - d)))

    w1 = params["w1"].astype(compute_dtype)
    if d_pad != d:
        w1 = jnp.pad(w1, ((0, d_pad - d), (0, 0)))
    w2 = params["w2"].astype(compute_dtype)
    w3 = params["w3"].astype(compute_dtype)
    b1 = params["b1"].astype(jnp.float32)
    b2 = params["b2"].astype(jnp.float32)
    b3 = params["b3"].astype(jnp.float32)

    flops = 2 * b_pad * (d_pad * H + H * H + H * d_out)
    transcendentals = b_pad * (2 * H + d_out)
    bytes_accessed = b_pad * d_pad * 4 + weight_bytes + b_pad * d_out * obytes

    kern = functools.partial(snn_kernel, act_dtype=act_dtype)

    def build(weight_mode):
        def wspec(shape):
            if weight_mode is None:
                return pl.BlockSpec(shape, lambda i: (0, 0))
            return pl.BlockSpec(shape, lambda i: (0, 0), pipeline_mode=weight_mode)

        return pl.pallas_call(
            kern,
            out_shape=jax.ShapeDtypeStruct((b_pad, d_out), out_dtype),
            grid=grid,
            in_specs=[
                pl.BlockSpec((tm, d_pad), lambda i: (i, 0)),   # x tile (pipelined)
                wspec((d_pad, H)),                             # w1 (resident)
                wspec((1, H)),                                 # b1
                wspec((H, H)),                                 # w2
                wspec((1, H)),                                 # b2
                wspec((H, d_out)),                             # w3
                wspec((1, d_out)),                             # b3
            ],
            out_specs=pl.BlockSpec((tm, d_out), lambda i: (i, 0)),
            compiler_params=pltpu.CompilerParams(
                dimension_semantics=("parallel",),
                vmem_limit_bytes=vmem_limit,
            ),
            cost_estimate=pl.CostEstimate(
                flops=flops,
                transcendentals=transcendentals,
                bytes_accessed=bytes_accessed,
            ),
        )

    args = (x_p, w1, b1, w2, b2, w3, b3)
    if weight_bytes > (4 << 20):
        # Large resident weights (matters on 64 MiB v7x): grid-invariant blocks don't
        # need double-buffering.  Fall back cleanly if this build rejects Buffered(1).
        try:
            out = build(pl.Buffered(1))(*args)
        except Exception:
            out = build(None)(*args)
    else:
        out = build(None)(*args)

    return out[:B]


def init_snn_params(key, d, d_out=32):
    """Init matching the PyTorch module's SELU branch:
       weights ~ N(0, 1/sqrt(fan_in)); biases ~ U(-1/sqrt(fan_in), 1/sqrt(fan_in))."""
    k1, k2, k3, k4, k5, k6 = jax.random.split(key, 6)
    h = HIDDEN

    w1 = jax.random.normal(k1, (d, h), jnp.float32) * (1.0 / d ** 0.5)
    b1 = jax.random.uniform(k2, (1, h), jnp.float32,
                            minval=-1.0 / d ** 0.5, maxval=1.0 / d ** 0.5)

    w2 = jax.random.normal(k3, (h, h), jnp.float32) * (1.0 / h ** 0.5)
    b2 = jax.random.uniform(k4, (1, h), jnp.float32,
                            minval=-1.0 / h ** 0.5, maxval=1.0 / h ** 0.5)

    w3 = jax.random.normal(k5, (h, d_out), jnp.float32) * (1.0 / h ** 0.5)
    b3 = jax.random.uniform(k6, (1, d_out), jnp.float32,
                            minval=-1.0 / h ** 0.5, maxval=1.0 / h ** 0.5)

    return dict(w1=w1, b1=b1, w2=w2, b2=b2, w3=w3, b3=b3)


def snn_reference(x, p, compute_dtype=jnp.bfloat16, act_dtype=jnp.float32):
    """Pure-JAX reference mirroring the kernel's numeric modes (bf16 matmul operands,
       f32 accumulation, act_dtype SELU for layers 1-2, f32 final SELU)."""
    cd = compute_dtype

    def mm(a, w):
        return jnp.dot(a.astype(cd), w.astype(cd), preferred_element_type=jnp.float32)

    h = _selu((mm(x, p["w1"]) + p["b1"]).astype(act_dtype))
    h = _selu((mm(h, p["w2"]) + p["b2"]).astype(act_dtype))
    return _selu(mm(h, p["w3"]) + p["b3"]).astype(jnp.float32)


if __name__ == "__main__":
    key = jax.random.PRNGKey(0)
    kx, kp = jax.random.split(key)

    B, d, d_out = 8, 64, 32
    x = jax.random.normal(kx, (B, d), jnp.float32)
    params = init_snn_params(kp, d, d_out)

    out = jax.block_until_ready(snn_forward(x, params))

    ref = snn_reference(x, params, act_dtype=_default_act_dtype())
    assert out.shape == (B, d_out), out.shape
    max_err = float(jnp.max(jnp.abs(out - ref)))
    assert jnp.allclose(out, ref, atol=5e-3, rtol=5e-3), \
        f"mismatch vs reference, max_err={max_err}"

    print("KERNEL_OK")
</pallas_src>

<mosaic_0001>
module attributes {stable_mosaic.version = 11 : i64} {
  func.func @snn_kernel(%arg0: i32, %arg1: memref<16x128xf32, #tpu.memory_space<vmem>>, %arg2: memref<128x256xbf16, #tpu.memory_space<vmem>>, %arg3: memref<1x256xf32, #tpu.memory_space<vmem>>, %arg4: memref<256x256xbf16, #tpu.memory_space<vmem>>, %arg5: memref<1x256xf32, #tpu.memory_space<vmem>>, %arg6: memref<256x32xbf16, #tpu.memory_space<vmem>>, %arg7: memref<1x32xf32, #tpu.memory_space<vmem>>, %arg8: memref<16x32xf32, #tpu.memory_space<vmem>>) attributes {dimension_semantics = [#tpu.dimension_semantics<parallel>], iteration_bounds = array<i64: 1>, scalar_prefetch = 0 : i64, scratch_operands = 0 : i64, tpu.core_type = #tpu.core_type<tc>, window_params = [{transform_indices = @transform_0, window_bounds = array<i64: 16, 128>}, {pipeline_mode = #tpu.pipeline_mode<synchronous>, transform_indices = @transform_1, window_bounds = array<i64: 128, 256>}, {pipeline_mode = #tpu.pipeline_mode<synchronous>, transform_indices = @transform_2, window_bounds = array<i64: 1, 256>}, {pipeline_mode = #tpu.pipeline_mode<synchronous>, transform_indices = @transform_3, window_bounds = array<i64: 256, 256>}, {pipeline_mode = #tpu.pipeline_mode<synchronous>, transform_indices = @transform_4, window_bounds = array<i64: 1, 256>}, {pipeline_mode = #tpu.pipeline_mode<synchronous>, transform_indices = @transform_5, window_bounds = array<i64: 256, 32>}, {pipeline_mode = #tpu.pipeline_mode<synchronous>, transform_indices = @transform_6, window_bounds = array<i64: 1, 32>}, {transform_indices = @transform_7, window_bounds = array<i64: 16, 32>}]} {
    %c0 = arith.constant 0 : index
    %c0_0 = arith.constant 0 : index
    %0 = vector.load %arg1[%c0, %c0_0] : memref<16x128xf32, #tpu.memory_space<vmem>>, vector<16x128xf32>
    %1 = arith.truncf %0 : vector<16x128xf32> to vector<16x128xbf16>
    %c0_1 = arith.constant 0 : index
    %c0_2 = arith.constant 0 : index
    %2 = vector.load %arg2[%c0_1, %c0_2] : memref<128x256xbf16, #tpu.memory_space<vmem>>, vector<128x256xbf16>
    %cst = arith.constant dense<0.000000e+00> : vector<16x256xf32>
    %3 = tpu.matmul %1, %2, %cst {dimension_numbers = #tpu.dot_dimension_numbers<[1], [0], [0], [1], [0, 0, 1, 1], [], []>} : vector<16x128xbf16>, vector<128x256xbf16>, vector<16x256xf32> -> vector<16x256xf32>
    %c0_3 = arith.constant 0 : index
    %c0_4 = arith.constant 0 : index
    %4 = vector.load %arg3[%c0_3, %c0_4] : memref<1x256xf32, #tpu.memory_space<vmem>>, vector<1x256xf32>
    %5 = vector.broadcast %4 : vector<1x256xf32> to vector<16x256xf32>
    %6 = arith.addf %3, %5 : vector<16x256xf32>
    %cst_5 = arith.constant 0.000000e+00 : f32
    %7 = vector.broadcast %cst_5 : f32 to vector<16x256xf32>
    %8 = arith.minimumf %6, %7 : vector<16x256xf32>
    %9 = math.exp %8 : vector<16x256xf32>
    %cst_6 = arith.constant 1.000000e+00 : f32
    %10 = vector.broadcast %cst_6 : f32 to vector<16x256xf32>
    %11 = arith.subf %9, %10 : vector<16x256xf32>
    %cst_7 = arith.constant 1.67326319 : f32
    %12 = vector.broadcast %cst_7 : f32 to vector<16x256xf32>
    %13 = arith.mulf %12, %11 : vector<16x256xf32>
    %cst_8 = arith.constant 0.000000e+00 : f32
    %14 = vector.broadcast %cst_8 : f32 to vector<16x256xf32>
    %15 = arith.cmpf ogt, %6, %14 : vector<16x256xf32>
    %16 = arith.select %15, %6, %13 : vector<16x256xi1>, vector<16x256xf32>
    %cst_9 = arith.constant 1.05070102 : f32
    %17 = vector.broadcast %cst_9 : f32 to vector<16x256xf32>
    %18 = arith.mulf %17, %16 : vector<16x256xf32>
    %19 = arith.truncf %18 : vector<16x256xf32> to vector<16x256xbf16>
    %c0_10 = arith.constant 0 : index
    %c0_11 = arith.constant 0 : index
    %20 = vector.load %arg4[%c0_10, %c0_11] : memref<256x256xbf16, #tpu.memory_space<vmem>>, vector<256x256xbf16>
    %cst_12 = arith.constant dense<0.000000e+00> : vector<16x256xf32>
    %21 = tpu.matmul %19, %20, %cst_12 {dimension_numbers = #tpu.dot_dimension_numbers<[1], [0], [0], [1], [0, 0, 1, 1], [], []>} : vector<16x256xbf16>, vector<256x256xbf16>, vector<16x256xf32> -> vector<16x256xf32>
    %c0_13 = arith.constant 0 : index
    %c0_14 = arith.constant 0 : index
    %22 = vector.load %arg5[%c0_13, %c0_14] : memref<1x256xf32, #tpu.memory_space<vmem>>, vector<1x256xf32>
    %23 = vector.broadcast %22 : vector<1x256xf32> to vector<16x256xf32>
    %24 = arith.addf %21, %23 : vector<16x256xf32>
    %cst_15 = arith.constant 0.000000e+00 : f32
    %25 = vector.broadcast %cst_15 : f32 to vector<16x256xf32>
    %26 = arith.minimumf %24, %25 : vector<16x256xf32>
    %27 = math.exp %26 : vector<16x256xf32>
    %cst_16 = arith.constant 1.000000e+00 : f32
    %28 = vector.broadcast %cst_16 : f32 to vector<16x256xf32>
    %29 = arith.subf %27, %28 : vector<16x256xf32>
    %cst_17 = arith.constant 1.67326319 : f32
    %30 = vector.broadcast %cst_17 : f32 to vector<16x256xf32>
    %31 = arith.mulf %30, %29 : vector<16x256xf32>
    %cst_18 = arith.constant 0.000000e+00 : f32
    %32 = vector.broadcast %cst_18 : f32 to vector<16x256xf32>
    %33 = arith.cmpf ogt, %24, %32 : vector<16x256xf32>
    %34 = arith.select %33, %24, %31 : vector<16x256xi1>, vector<16x256xf32>
    %cst_19 = arith.constant 1.05070102 : f32
    %35 = vector.broadcast %cst_19 : f32 to vector<16x256xf32>
    %36 = arith.mulf %35, %34 : vector<16x256xf32>
    %37 = arith.truncf %36 : vector<16x256xf32> to vector<16x256xbf16>
    %c0_20 = arith.constant 0 : index
    %c0_21 = arith.constant 0 : index
    %38 = vector.load %arg6[%c0_20, %c0_21] : memref<256x32xbf16, #tpu.memory_space<vmem>>, vector<256x32xbf16>
    %cst_22 = arith.constant dense<0.000000e+00> : vector<16x32xf32>
    %39 = tpu.matmul %37, %38, %cst_22 {dimension_numbers = #tpu.dot_dimension_numbers<[1], [0], [0], [1], [0, 0, 1, 1], [], []>} : vector<16x256xbf16>, vector<256x32xbf16>, vector<16x32xf32> -> vector<16x32xf32>
    %c0_23 = arith.constant 0 : index
    %c0_24 = arith.constant 0 : index
    %40 = vector.load %arg7[%c0_23, %c0_24] : memref<1x32xf32, #tpu.memory_space<vmem>>, vector<1x32xf32>
    %41 = vector.broadcast %40 : vector<1x32xf32> to vector<16x32xf32>
    %42 = arith.addf %39, %41 : vector<16x32xf32>
    %cst_25 = arith.constant 0.000000e+00 : f32
    %43 = vector.broadcast %cst_25 : f32 to vector<16x32xf32>
    %44 = arith.minimumf %42, %43 : vector<16x32xf32>
    %45 = math.exp %44 : vector<16x32xf32>
    %cst_26 = arith.constant 1.000000e+00 : f32
    %46 = vector.broadcast %cst_26 : f32 to vector<16x32xf32>
    %47 = arith.subf %45, %46 : vector<16x32xf32>
    %cst_27 = arith.constant 1.67326319 : f32
    %48 = vector.broadcast %cst_27 : f32 to vector<16x32xf32>
    %49 = arith.mulf %48, %47 : vector<16x32xf32>
    %cst_28 = arith.constant 0.000000e+00 : f32
    %50 = vector.broadcast %cst_28 : f32 to vector<16x32xf32>
    %51 = arith.cmpf ogt, %42, %50 : vector<16x32xf32>
    %52 = arith.select %51, %42, %49 : vector<16x32xi1>, vector<16x32xf32>
    %cst_29 = arith.constant 1.05070102 : f32
    %53 = vector.broadcast %cst_29 : f32 to vector<16x32xf32>
    %54 = arith.mulf %53, %52 : vector<16x32xf32>
    %c0_30 = arith.constant 0 : index
    %c0_31 = arith.constant 0 : index
    %55 = vector.load %arg8[%c0_30, %c0_31] : memref<16x32xf32, #tpu.memory_space<vmem>>, vector<16x32xf32>
    tpu.vector_store %arg8[%c0_30, %c0_31], %54 {strides = array<i32>} : memref<16x32xf32, #tpu.memory_space<vmem>>, vector<16x32xf32>,
    return
  }
  func.func @transform_0(%arg0: i32) -> (i32, i32) {
    %c0_i32 = arith.constant 0 : i32
    %c0_i32_0 = arith.constant 0 : i32
    return %arg0, %c0_i32 : i32, i32
  }
  func.func @transform_1(%arg0: i32) -> (i32, i32) {
    %c0_i32 = arith.constant 0 : i32
    %c0_i32_0 = arith.constant 0 : i32
    %c0_i32_1 = arith.constant 0 : i32
    return %c0_i32, %c0_i32_0 : i32, i32
  }
  func.func @transform_2(%arg0: i32) -> (i32, i32) {
    %c0_i32 = arith.constant 0 : i32
    %c0_i32_0 = arith.constant 0 : i32
    %c0_i32_1 = arith.constant 0 : i32
    return %c0_i32, %c0_i32_0 : i32, i32
  }
  func.func @transform_3(%arg0: i32) -> (i32, i32) {
    %c0_i32 = arith.constant 0 : i32
    %c0_i32_0 = arith.constant 0 : i32
    %c0_i32_1 = arith.constant 0 : i32
    return %c0_i32, %c0_i32_0 : i32, i32
  }
  func.func @transform_4(%arg0: i32) -> (i32, i32) {
    %c0_i32 = arith.constant 0 : i32
    %c0_i32_0 = arith.constant 0 : i32
    %c0_i32_1 = arith.constant 0 : i32
    return %c0_i32, %c0_i32_0 : i32, i32
  }
  func.func @transform_5(%arg0: i32) -> (i32, i32) {
    %c0_i32 = arith.constant 0 : i32
    %c0_i32_0 = arith.constant 0 : i32
    %c0_i32_1 = arith.constant 0 : i32
    return %c0_i32, %c0_i32_0 : i32, i32
  }
  func.func @transform_6(%arg0: i32) -> (i32, i32) {
    %c0_i32 = arith.constant 0 : i32
    %c0_i32_0 = arith.constant 0 : i32
    %c0_i32_1 = arith.constant 0 : i32
    return %c0_i32, %c0_i32_0 : i32, i32
  }
  func.func @transform_7(%arg0: i32) -> (i32, i32) {
    %c0_i32 = arith.constant 0 : i32
    %c0_i32_0 = arith.constant 0 : i32
    return %arg0, %c0_i32 : i32, i32
  }
}

</mosaic_0001>

<llo_original>
// kernel: tpu_custom_call.1
$region0: #{tpu_custom_call.1}
  #allocation0 [shape = 'u32[]', space=smem, size = 0x4, offset = 0x4, fixed_abs, tag = 'smem constant byte address 0x4 - core index']
  #allocation1 [shape = 'u32[144,128]{1,0:T(1,128)}', space=vmem, size = 0x12000, scoped, tag = 'internal scratch']
  %s0 = inlined_call_operand.vmem [shape: f32[16,128], index: 0, kind: input, shape index: {}]
  %s1 = inlined_call_operand.vmem [shape: bf16[128,256], index: 1, kind: input, shape index: {}]
  %s2 = inlined_call_operand.vmem [shape: f32[1,256], index: 2, kind: input, shape index: {}]
  %s3 = inlined_call_operand.hbm [shape: bf16[256,256], index: 3, kind: input, shape index: {}]
  %s4 = inlined_call_operand.vmem [shape: f32[1,256], index: 4, kind: input, shape index: {}]
  %s5 = inlined_call_operand.vmem [shape: bf16[256,32], index: 5, kind: input, shape index: {}]
  %s6 = inlined_call_operand.vmem [shape: f32[1,32], index: 6, kind: input, shape index: {}]
  %s7 = inlined_call_operand.hbm [shape: f32[16,32], index: 7, kind: output, shape index: {}]
  %s8 = sld [smem:[#allocation0]]
  $region42: #{tpu_custom_call.1} parent=0
    _
  %s10 = ssub.s32 1, %s8
  %s11 = scalar_select 0, %s10, %s8
  $region1: #{tpu_custom_call.1} parent=0
    #allocation2 [shape = 'u8[131072]{0}', space=vmem, size = 0x20000, scoped, tag = 'input window, operand 3, single buffered']
    #allocation3 [shape = 's32[1]{0}', space=sflag, size = 0x4, scoped, tag = 'scoped memory for tpu_custom_call.1']
    #allocation4 [shape = 's32[1]{0}', space=sflag, size = 0x4, scoped, tag = 'scoped memory for tpu_custom_call.1']
    #allocation5 [shape = 'u8[8192]{0}', space=vmem, size = 0x2000, scoped, tag = 'output window, operand 0, single buffered']
    %12 = vsyncpa [#allocation3], 0
    %13 = vsyncpa [#allocation4], 0
    // Predicated region
    $region2: #{tpu_custom_call.1} parent=1 // pred_check
      _
    $region3: #{tpu_custom_call.1} parent=1 // pred_check_branch
      %15 = sbr.rel (0) target = $region5
    $region4: #{tpu_custom_call.1} parent=1 // pred_region
      _
    $region5: #{tpu_custom_call.1} parent=1 // pred_fallthru
      _
    // Predicated region
    $region6: #{tpu_custom_call.1} parent=1 // pred_check
      _
    $region7: #{tpu_custom_call.1} parent=1 // pred_check_branch
      %17 = sbr.rel (0) target = $region9
    $region8: #{tpu_custom_call.1} parent=1 // pred_region
      _
    $region9: #{tpu_custom_call.1} parent=1 // pred_fallthru
      _
    // Predicated region
    $region10: #{tpu_custom_call.1} parent=1 // pred_check
      _
    $region11: #{tpu_custom_call.1} parent=1 // pred_check_branch
      %19 = sbr.rel (0) target = $region13
    $region12: #{tpu_custom_call.1} parent=1 // pred_region
      _
    $region13: #{tpu_custom_call.1} parent=1 // pred_fallthru
      _
    // Predicated region
    $region14: #{tpu_custom_call.1} parent=1 // pred_check
      _
    $region15: #{tpu_custom_call.1} parent=1 // pred_check_branch
      %21 = sbr.rel (0) target = $region17
    $region16: #{tpu_custom_call.1} parent=1 // pred_region
      %s23 = ssub.s32 4096, 4096
      %24 = vsyncadd [#allocation3], %s23
      %s25 = sshll.u32 [#allocation2], 4
      %s26 = int_to_ptr.vmem [resolvable:$true] %s25
      %31 = dma.hbm_to_vmem [thread:$0]  %s3, 4096, %s26, [#allocation3], 128, 128, 8
    $region17: #{tpu_custom_call.1} parent=1 // pred_fallthru
      _
    // Predicated region
    $region18: #{tpu_custom_call.1} parent=1 // pred_check
      _
    $region19: #{tpu_custom_call.1} parent=1 // pred_check_branch
      %33 = sbr.rel (0) target = $region21
    $region20: #{tpu_custom_call.1} parent=1 // pred_region
      _
    $region21: #{tpu_custom_call.1} parent=1 // pred_fallthru
      _
    // Predicated region
    $region22: #{tpu_custom_call.1} parent=1 // pred_check
      _
    $region23: #{tpu_custom_call.1} parent=1 // pred_check_branch
      %35 = sbr.rel (0) target = $region25
    $region24: #{tpu_custom_call.1} parent=1 // pred_region
      _
    $region25: #{tpu_custom_call.1} parent=1 // pred_fallthru
      _
    // Predicated region
    $region26: #{tpu_custom_call.1} parent=1 // pred_check
      _
    $region27: #{tpu_custom_call.1} parent=1 // pred_check_branch
      %37 = sbr.rel (0) target = $region29
    $region28: #{tpu_custom_call.1} parent=1 // pred_region
      _
    $region29: #{tpu_custom_call.1} parent=1 // pred_fallthru
      _
    // Predicated region
    $region30: #{tpu_custom_call.1} parent=1 // pred_check
      _
    $region31: #{tpu_custom_call.1} parent=1 // pred_check_branch
      %39 = sbr.rel (0) target = $region33
    $region32: #{tpu_custom_call.1} parent=1 // pred_region
      %40 = dma.done [#allocation3], 4096
    $region33: #{tpu_custom_call.1} parent=1 // pred_fallthru
      _
    %v42 = vld [vmem:[%s0] sm:$0xff]
    %v43 = vld [vmem:[%s0 + $0x8] sm:$0xff]
    %v44 = vpack.c.bf16 %v43, %v42
    %v45 = vld [vmem:[%s1] sm:$0xff]
    %v46 = vld [vmem:[%s1 + $0x8] sm:$0xff]
    %v47 = vld [vmem:[%s1 + $0x10] sm:$0xff]
    %v48 = vld [vmem:[%s1 + $0x18] sm:$0xff]
    %v49 = vld [vmem:[%s1 + $0x20] sm:$0xff]
    %v50 = vld [vmem:[%s1 + $0x28] sm:$0xff]
    %v51 = vld [vmem:[%s1 + $0x30] sm:$0xff]
    %v52 = vld [vmem:[%s1 + $0x38] sm:$0xff]
    %v53 = vld [vmem:[%s1 + $0x40] sm:$0xff]
    %v54 = vld [vmem:[%s1 + $0x48] sm:$0xff]
    %v55 = vld [vmem:[%s1 + $0x50] sm:$0xff]
    %v56 = vld [vmem:[%s1 + $0x58] sm:$0xff]
    %v57 = vld [vmem:[%s1 + $0x60] sm:$0xff]
    %v58 = vld [vmem:[%s1 + $0x68] sm:$0xff]
    %v59 = vld [vmem:[%s1 + $0x70] sm:$0xff]
    %v60 = vld [vmem:[%s1 + $0x78] sm:$0xff]
    %v61 = vld [vmem:[%s2] sm:$0x3]
    %v63 = vlaneseq
    %v64 = vshrl.u32 %v63, 7
    %v65 = vsub.s32 0, %v64
    %v66 = vrot.slane %v61, %v65
    %v67 = vlaneseq
    %v68 = vshrl.u32 %v67, 7
    %v69 = vsub.s32 1, %v68
    %v70 = vrot.slane %v61, %v69
    %v89 = vunpack.c.l.b16 %v45
    %v90 = vunpack.c.h.b16 %v45
    %v91 = vunpack.c.l.b16 %v46
    %v92 = vunpack.c.h.b16 %v46
    %v93 = vunpack.c.l.b16 %v47
    %v94 = vunpack.c.h.b16 %v47
    %v95 = vunpack.c.l.b16 %v48
    %v96 = vunpack.c.h.b16 %v48
    %v97 = vunpack.c.l.b16 %v49
    %v98 = vunpack.c.h.b16 %v49
    %v99 = vunpack.c.l.b16 %v50
    %v100 = vunpack.c.h.b16 %v50
    %v101 = vunpack.c.l.b16 %v51
    %v102 = vunpack.c.h.b16 %v51
    %v103 = vunpack.c.l.b16 %v52
    %v104 = vunpack.c.h.b16 %v52
    %v105 = vunpack.c.l.b16 %v53
    %v106 = vunpack.c.h.b16 %v53
    %v107 = vunpack.c.l.b16 %v54
    %v108 = vunpack.c.h.b16 %v54
    %v109 = vunpack.c.l.b16 %v55
    %v110 = vunpack.c.h.b16 %v55
    %v111 = vunpack.c.l.b16 %v56
    %v112 = vunpack.c.h.b16 %v56
    %v113 = vunpack.c.l.b16 %v57
    %v114 = vunpack.c.h.b16 %v57
    %v115 = vunpack.c.l.b16 %v58
    %v116 = vunpack.c.h.b16 %v58
    %v117 = vunpack.c.l.b16 %v59
    %v118 = vunpack.c.h.b16 %v59
    %v119 = vunpack.c.l.b16 %v60
    %v120 = vunpack.c.h.b16 %v60
    %v121 = vpack.c.b16 %v91, %v89
    %v122 = vpack.c.b16 %v92, %v90
    %v123 = vpack.c.b16 %v95, %v93
    %v124 = vpack.c.b16 %v96, %v94
    %v125 = vpack.c.b16 %v99, %v97
    %v126 = vpack.c.b16 %v100, %v98
    %v127 = vpack.c.b16 %v103, %v101
    %v128 = vpack.c.b16 %v104, %v102
    %v129 = vpack.c.b16 %v107, %v105
    %v130 = vpack.c.b16 %v108, %v106
    %v131 = vpack.c.b16 %v111, %v109
    %v132 = vpack.c.b16 %v112, %v110
    %v133 = vpack.c.b16 %v115, %v113
    %v134 = vpack.c.b16 %v116, %v114
    %v135 = vpack.c.b16 %v119, %v117
    %v136 = vpack.c.b16 %v120, %v118
    %153 = vmatprep.subr.bf16.mxu0 %v122
    %154 = vmatpush1.bf16.msra.mxu0 %v121
    %155 = vmatprep.subr.bf16.mxu0 %v124
    %156 = vmatpush1.bf16.msra.mxu0 %v123
    %157 = vmatprep.subr.bf16.mxu0 %v126
    %158 = vmatpush1.bf16.msra.mxu0 %v125
    %159 = vmatprep.subr.bf16.mxu0 %v128
    %160 = vmatpush1.bf16.msra.mxu0 %v127
    %161 = vmatprep.subr.bf16.mxu0 %v130
    %162 = vmatpush1.bf16.msra.mxu0 %v129
    %163 = vmatprep.subr.bf16.mxu0 %v132
    %164 = vmatpush1.bf16.msra.mxu0 %v131
    %165 = vmatprep.subr.bf16.mxu0 %v134
    %166 = vmatpush1.bf16.msra.mxu0 %v133
    %167 = vmatprep.subr.bf16.mxu0 %v136
    %168 = vmatpush1.bf16.msra.mxu0 %v135
    %169 = vmatprep.subr.bf16.mxu0 0
    %170 = vmatpush1.bf16.msra.mxu0 0
    %171 = vmatprep.subr.bf16.mxu0 0
    %172 = vmatpush1.bf16.msra.mxu0 0
    %173 = vmatprep.subr.bf16.mxu0 0
    %174 = vmatpush1.bf16.msra.mxu0 0
    %175 = vmatprep.subr.bf16.mxu0 0
    %176 = vmatpush1.bf16.msra.mxu0 0
    %177 = vmatprep.subr.bf16.mxu0 0
    %178 = vmatpush1.bf16.msra.mxu0 0
    %179 = vmatprep.subr.bf16.mxu0 0
    %180 = vmatpush1.bf16.msra.mxu0 0
    %181 = vmatprep.subr.bf16.mxu0 0
    %182 = vmatpush1.bf16.msra.mxu0 0
    %183 = vmatprep.subr.bf16.mxu0 0
    %184 = vmatpush1.bf16.msra.mxu0 0
    %185 = vmatprep.mubr.bf16.mxu0 0
    %186 = vmatmul.mubr.bf16.gmra.mrb[0].mxu0 %v44
    %v187 = vpop.f32.mrb[0].mxu0
    %v188 = vadd.f32 %v66, %v187
    %v189 = vpop.f32.mrb[0].mxu0
    %v190 = vadd.f32 %v70, %v189
    %v191 = vpop.f32.mrb[0].mxu0
    %v192 = vadd.f32 %v66, %v191
    %v193 = vpop.f32.mrb[0].mxu0
    %v194 = vadd.f32 %v70, %v193
    %195 = vdwg.mxu0
    %v196 = vmin.f32 %v188, 0.0
    %v197 = vmin.f32 %v190, 0.0
    %v198 = vmin.f32 %v192, 0.0
    %v199 = vmin.f32 %v194, 0.0
    %v200 = vmul.f32 %v196, 1.442695
    %v201 = vpow.pop %v200
    %v202 = vmul.f32 %v197, 1.442695
    %v203 = vpow.pop %v202
    %v204 = vmul.f32 %v198, 1.442695
    %v205 = vpow.pop %v204
    %v206 = vmul.f32 %v199, 1.442695
    %v207 = vpow.pop %v206
    %v208 = vsub.f32 %v201, 1.0
    %v209 = vsub.f32 %v203, 1.0
    %v210 = vsub.f32 %v205, 1.0
    %v211 = vsub.f32 %v207, 1.0
    %v212 = vmul.f32 %v208, 1.6732632
    %v213 = vmul.f32 %v209, 1.6732632
    %v214 = vmul.f32 %v210, 1.6732632
    %v215 = vmul.f32 %v211, 1.6732632
    %vm216 = vcmp.gt.f32.partialorder %v188, 0.0
    %vm217 = vcmp.gt.f32.partialorder %v190, 0.0
    %vm218 = vcmp.gt.f32.partialorder %v192, 0.0
    %vm219 = vcmp.gt.f32.partialorder %v194, 0.0
    %v220 = vsel %vm216, %v188, %v212
    %v221 = vsel %vm217, %v190, %v213
    %v222 = vsel %vm218, %v192, %v214
    %v223 = vsel %vm219, %v194, %v215
    %v224 = vmul.f32 %v220, 1.050701
    %v225 = vmul.f32 %v221, 1.050701
    %v226 = vmul.f32 %v222, 1.050701
    %v227 = vmul.f32 %v223, 1.050701
    %v228 = vpack.c.bf16 %v226, %v224
    %v229 = vpack.c.bf16 %v227, %v225
    %v230 = vld [vmem:[#allocation2] sm:$0xff]
    %v231 = vld [vmem:[#allocation2 + $0x8] sm:$0xff]
    %v232 = vld [vmem:[#allocation2 + $0x10] sm:$0xff]
    %v233 = vld [vmem:[#allocation2 + $0x18] sm:$0xff]
    %v234 = vld [vmem:[#allocation2 + $0x20] sm:$0xff]
    %v235 = vld [vmem:[#allocation2 + $0x28] sm:$0xff]
    %v236 = vld [vmem:[#allocation2 + $0x30] sm:$0xff]
    %v237 = vld [vmem:[#allocation2 + $0x38] sm:$0xff]
    %v238 = vld [vmem:[#allocation2 + $0x40] sm:$0xff]
    %v239 = vld [vmem:[#allocation2 + $0x48] sm:$0xff]
    %v240 = vld [vmem:[#allocation2 + $0x50] sm:$0xff]
    %v241 = vld [vmem:[#allocation2 + $0x58] sm:$0xff]
    %v242 = vld [vmem:[#allocation2 + $0x60] sm:$0xff]
    %v243 = vld [vmem:[#allocation2 + $0x68] sm:$0xff]
    %v244 = vld [vmem:[#allocation2 + $0x70] sm:$0xff]
    %v245 = vld [vmem:[#allocation2 + $0x78] sm:$0xff]
    %v246 = vld [vmem:[#allocation2 + $0x80] sm:$0xff]
    %v247 = vld [vmem:[#allocation2 + $0x88] sm:$0xff]
    %v248 = vld [vmem:[#allocation2 + $0x90] sm:$0xff]
    %v249 = vld [vmem:[#allocation2 + $0x98] sm:$0xff]
    %v250 = vld [vmem:[#allocation2 + $0xa0] sm:$0xff]
    %v251 = vld [vmem:[#allocation2 + $0xa8] sm:$0xff]
    %v252 = vld [vmem:[#allocation2 + $0xb0] sm:$0xff]
    %v253 = vld [vmem:[#allocation2 + $0xb8] sm:$0xff]
    %v254 = vld [vmem:[#allocation2 + $0xc0] sm:$0xff]
    %v255 = vld [vmem:[#allocation2 + $0xc8] sm:$0xff]
    %v256 = vld [vmem:[#allocation2 + $0xd0] sm:$0xff]
    %v257 = vld [vmem:[#allocation2 + $0xd8] sm:$0xff]
    %v258 = vld [vmem:[#allocation2 + $0xe0] sm:$0xff]
    %v259 = vld [vmem:[#allocation2 + $0xe8] sm:$0xff]
    %v260 = vld [vmem:[#allocation2 + $0xf0] sm:$0xff]
    %v261 = vld [vmem:[#allocation2 + $0xf8] sm:$0xff]
    %v262 = vld [vmem:[%s4] sm:$0x3]
    %v264 = vlaneseq
    %v265 = vshrl.u32 %v264, 7
    %v266 = vsub.s32 0, %v265
    %v267 = vrot.slane %v262, %v266
    %v268 = vlaneseq
    %v269 = vshrl.u32 %v268, 7
    %v270 = vsub.s32 1, %v269
    %v271 = vrot.slane %v262, %v270
    %v306 = vunpack.c.l.b16 %v230
    %v307 = vunpack.c.h.b16 %v230
    %v308 = vunpack.c.l.b16 %v231
    %v309 = vunpack.c.h.b16 %v231
    %v310 = vunpack.c.l.b16 %v232
    %v311 = vunpack.c.h.b16 %v232
    %v312 = vunpack.c.l.b16 %v233
    %v313 = vunpack.c.h.b16 %v233
    %v314 = vunpack.c.l.b16 %v234
    %v315 = vunpack.c.h.b16 %v234
    %v316 = vunpack.c.l.b16 %v235
    %v317 = vunpack.c.h.b16 %v235
    %v318 = vunpack.c.l.b16 %v236
    %v319 = vunpack.c.h.b16 %v236
    %v320 = vunpack.c.l.b16 %v237
    %v321 = vunpack.c.h.b16 %v237
    %v322 = vunpack.c.l.b16 %v238
    %v323 = vunpack.c.h.b16 %v238
    %v324 = vunpack.c.l.b16 %v239
    %v325 = vunpack.c.h.b16 %v239
    %v326 = vunpack.c.l.b16 %v240
    %v327 = vunpack.c.h.b16 %v240
    %v328 = vunpack.c.l.b16 %v241
    %v329 = vunpack.c.h.b16 %v241
    %v330 = vunpack.c.l.b16 %v242
    %v331 = vunpack.c.h.b16 %v242
    %v332 = vunpack.c.l.b16 %v243
    %v333 = vunpack.c.h.b16 %v243
    %v334 = vunpack.c.l.b16 %v244
    %v335 = vunpack.c.h.b16 %v244
    %v336 = vunpack.c.l.b16 %v245
    %v337 = vunpack.c.h.b16 %v245
    %v338 = vunpack.c.l.b16 %v246
    %v339 = vunpack.c.h.b16 %v246
    %v340 = vunpack.c.l.b16 %v247
    %v341 = vunpack.c.h.b16 %v247
    %v342 = vunpack.c.l.b16 %v248
    %v343 = vunpack.c.h.b16 %v248
    %v344 = vunpack.c.l.b16 %v249
    %v345 = vunpack.c.h.b16 %v249
    %v346 = vunpack.c.l.b16 %v250
    %v347 = vunpack.c.h.b16 %v250
    %v348 = vunpack.c.l.b16 %v251
    %v349 = vunpack.c.h.b16 %v251
    %v350 = vunpack.c.l.b16 %v252
    %v351 = vunpack.c.h.b16 %v252
    %v352 = vunpack.c.l.b16 %v253
    %v353 = vunpack.c.h.b16 %v253
    %v354 = vunpack.c.l.b16 %v254
    %v355 = vunpack.c.h.b16 %v254
    %v356 = vunpack.c.l.b16 %v255
    %v357 = vunpack.c.h.b16 %v255
    %v358 = vunpack.c.l.b16 %v256
    %v359 = vunpack.c.h.b16 %v256
    %v360 = vunpack.c.l.b16 %v257
    %v361 = vunpack.c.h.b16 %v257
    %v362 = vunpack.c.l.b16 %v258
    %v363 = vunpack.c.h.b16 %v258
    %v364 = vunpack.c.l.b16 %v259
    %v365 = vunpack.c.h.b16 %v259
    %v366 = vunpack.c.l.b16 %v260
    %v367 = vunpack.c.h.b16 %v260
    %v368 = vunpack.c.l.b16 %v261
    %v369 = vunpack.c.h.b16 %v261
    %v370 = vpack.c.b16 %v308, %v306
    %v371 = vpack.c.b16 %v309, %v307
    %v372 = vpack.c.b16 %v312, %v310
    %v373 = vpack.c.b16 %v313, %v311
    %v374 = vpack.c.b16 %v316, %v314
    %v375 = vpack.c.b16 %v317, %v315
    %v376 = vpack.c.b16 %v320, %v318
    %v377 = vpack.c.b16 %v321, %v319
    %v378 = vpack.c.b16 %v324, %v322
    %v379 = vpack.c.b16 %v325, %v323
    %v380 = vpack.c.b16 %v328, %v326
    %v381 = vpack.c.b16 %v329, %v327
    %v382 = vpack.c.b16 %v332, %v330
    %v383 = vpack.c.b16 %v333, %v331
    %v384 = vpack.c.b16 %v336, %v334
    %v385 = vpack.c.b16 %v337, %v335
    %v386 = vpack.c.b16 %v340, %v338
    %v387 = vpack.c.b16 %v341, %v339
    %v388 = vpack.c.b16 %v344, %v342
    %v389 = vpack.c.b16 %v345, %v343
    %v390 = vpack.c.b16 %v348, %v346
    %v391 = vpack.c.b16 %v349, %v347
    %v392 = vpack.c.b16 %v352, %v350
    %v393 = vpack.c.b16 %v353, %v351
    %v394 = vpack.c.b16 %v356, %v354
    %v395 = vpack.c.b16 %v357, %v355
    %v396 = vpack.c.b16 %v360, %v358
    %v397 = vpack.c.b16 %v361, %v359
    %v398 = vpack.c.b16 %v364, %v362
    %v399 = vpack.c.b16 %v365, %v363
    %v400 = vpack.c.b16 %v368, %v366
    %v401 = vpack.c.b16 %v369, %v367
    %434 = vmatprep.subr.bf16.mxu0 %v371
    %435 = vmatpush1.bf16.msra.mxu0 %v370
    %436 = vmatprep.subr.bf16.mxu0 %v373
    %437 = vmatpush1.bf16.msra.mxu0 %v372
    %438 = vmatprep.subr.bf16.mxu0 %v375
    %439 = vmatpush1.bf16.msra.mxu0 %v374
    %440 = vmatprep.subr.bf16.mxu0 %v377
    %441 = vmatpush1.bf16.msra.mxu0 %v376
    %442 = vmatprep.subr.bf16.mxu0 %v379
    %443 = vmatpush1.bf16.msra.mxu0 %v378
    %444 = vmatprep.subr.bf16.mxu0 %v381
    %445 = vmatpush1.bf16.msra.mxu0 %v380
    %446 = vmatprep.subr.bf16.mxu0 %v383
    %447 = vmatpush1.bf16.msra.mxu0 %v382
    %448 = vmatprep.subr.bf16.mxu0 %v385
    %449 = vmatpush1.bf16.msra.mxu0 %v384
    %450 = vmatprep.subr.bf16.mxu0 %v387
    %451 = vmatpush1.bf16.msra.mxu0 %v386
    %452 = vmatprep.subr.bf16.mxu0 %v389
    %453 = vmatpush1.bf16.msra.mxu0 %v388
    %454 = vmatprep.subr.bf16.mxu0 %v391
    %455 = vmatpush1.bf16.msra.mxu0 %v390
    %456 = vmatprep.subr.bf16.mxu0 %v393
    %457 = vmatpush1.bf16.msra.mxu0 %v392
    %458 = vmatprep.subr.bf16.mxu0 %v395
    %459 = vmatpush1.bf16.msra.mxu0 %v394
    %460 = vmatprep.subr.bf16.mxu0 %v397
    %461 = vmatpush1.bf16.msra.mxu0 %v396
    %462 = vmatprep.subr.bf16.mxu0 %v399
    %463 = vmatpush1.bf16.msra.mxu0 %v398
    %464 = vmatprep.subr.bf16.mxu0 %v401
    %465 = vmatpush1.bf16.msra.mxu0 %v400
    %466 = vmatprep.mubr.bf16.mxu0 %v229
    %467 = vmatmul.mubr.bf16.gmra.mrb[0].mxu0 %v228
    %v468 = vpop.f32.mrb[0].mxu0
    %v469 = vadd.f32 %v267, %v468
    %v470 = vpop.f32.mrb[0].mxu0
    %v471 = vadd.f32 %v271, %v470
    %v472 = vpop.f32.mrb[0].mxu0
    %v473 = vadd.f32 %v267, %v472
    %v474 = vpop.f32.mrb[0].mxu0
    %v475 = vadd.f32 %v271, %v474
    %476 = vdwg.mxu0
    %v477 = vmin.f32 %v469, 0.0
    %v478 = vmin.f32 %v471, 0.0
    %v479 = vmin.f32 %v473, 0.0
    %v480 = vmin.f32 %v475, 0.0
    %v481 = vmul.f32 %v477, 1.442695
    %v482 = vpow.pop %v481
    %v483 = vmul.f32 %v478, 1.442695
    %v484 = vpow.pop %v483
    %v485 = vmul.f32 %v479, 1.442695
    %v486 = vpow.pop %v485
    %v487 = vmul.f32 %v480, 1.442695
    %v488 = vpow.pop %v487
    %v489 = vsub.f32 %v482, 1.0
    %v490 = vsub.f32 %v484, 1.0
    %v491 = vsub.f32 %v486, 1.0
    %v492 = vsub.f32 %v488, 1.0
    %v493 = vmul.f32 %v489, 1.6732632
    %v494 = vmul.f32 %v490, 1.6732632
    %v495 = vmul.f32 %v491, 1.6732632
    %v496 = vmul.f32 %v492, 1.6732632
    %vm497 = vcmp.gt.f32.partialorder %v469, 0.0
    %vm498 = vcmp.gt.f32.partialorder %v471, 0.0
    %vm499 = vcmp.gt.f32.partialorder %v473, 0.0
    %vm500 = vcmp.gt.f32.partialorder %v475, 0.0
    %v501 = vsel %vm497, %v469, %v493
    %v502 = vsel %vm498, %v471, %v494
    %v503 = vsel %vm499, %v473, %v495
    %v504 = vsel %vm500, %v475, %v496
    %v505 = vmul.f32 %v501, 1.050701
    %v506 = vmul.f32 %v502, 1.050701
    %v507 = vmul.f32 %v503, 1.050701
    %v508 = vmul.f32 %v504, 1.050701
    %v509 = vpack.c.bf16 %v507, %v505
    %v510 = vpack.c.bf16 %v508, %v506
    %v511 = vld [vmem:[%s5] sm:$0xf]
    %v512 = vld [vmem:[%s5 + $0x4] sm:$0xf]
    %v513 = vld [vmem:[%s5 + $0x8] sm:$0xf]
    %v514 = vld [vmem:[%s5 + $0xc] sm:$0xf]
    %v515 = vld [vmem:[%s5 + $0x10] sm:$0xf]
    %v516 = vld [vmem:[%s5 + $0x14] sm:$0xf]
    %v517 = vld [vmem:[%s5 + $0x18] sm:$0xf]
    %v518 = vld [vmem:[%s5 + $0x1c] sm:$0xf]
    %v519 = vld [vmem:[%s5 + $0x20] sm:$0xf]
    %v520 = vld [vmem:[%s5 + $0x24] sm:$0xf]
    %v521 = vld [vmem:[%s5 + $0x28] sm:$0xf]
    %v522 = vld [vmem:[%s5 + $0x2c] sm:$0xf]
    %v523 = vld [vmem:[%s5 + $0x30] sm:$0xf]
    %v524 = vld [vmem:[%s5 + $0x34] sm:$0xf]
    %v525 = vld [vmem:[%s5 + $0x38] sm:$0xf]
    %v526 = vld [vmem:[%s5 + $0x3c] sm:$0xf]
    %v527 = vld [vmem:[%s5 + $0x40] sm:$0xf]
    %v528 = vld [vmem:[%s5 + $0x44] sm:$0xf]
    %v529 = vld [vmem:[%s5 + $0x48] sm:$0xf]
    %v530 = vld [vmem:[%s5 + $0x4c] sm:$0xf]
    %v531 = vld [vmem:[%s5 + $0x50] sm:$0xf]
    %v532 = vld [vmem:[%s5 + $0x54] sm:$0xf]
    %v533 = vld [vmem:[%s5 + $0x58] sm:$0xf]
    %v534 = vld [vmem:[%s5 + $0x5c] sm:$0xf]
    %v535 = vld [vmem:[%s5 + $0x60] sm:$0xf]
    %v536 = vld [vmem:[%s5 + $0x64] sm:$0xf]
    %v537 = vld [vmem:[%s5 + $0x68] sm:$0xf]
    %v538 = vld [vmem:[%s5 + $0x6c] sm:$0xf]
    %v539 = vld [vmem:[%s5 + $0x70] sm:$0xf]
    %v540 = vld [vmem:[%s5 + $0x74] sm:$0xf]
    %v541 = vld [vmem:[%s5 + $0x78] sm:$0xf]
    %v542 = vld [vmem:[%s5 + $0x7c] sm:$0xf]
    %v543 = vld [vmem:[%s6] sm:$0x1]
    %v545 = vlaneseq
    %v546 = vshrl.u32 %v545, 7
    %v547 = vsub.s32 0, %v546
    %v548 = vrot.slane %v543, %v547
    %v582 = vunpack.c.l.b16 %v511
    %v583 = vunpack.c.l.b16 %v512
    %v584 = vunpack.c.l.b16 %v513
    %v585 = vunpack.c.l.b16 %v514
    %v586 = vunpack.c.l.b16 %v515
    %v587 = vunpack.c.l.b16 %v516
    %v588 = vunpack.c.l.b16 %v517
    %v589 = vunpack.c.l.b16 %v518
    %v590 = vunpack.c.l.b16 %v519
    %v591 = vunpack.c.l.b16 %v520
    %v592 = vunpack.c.l.b16 %v521
    %v593 = vunpack.c.l.b16 %v522
    %v594 = vunpack.c.l.b16 %v523
    %v595 = vunpack.c.l.b16 %v524
    %v596 = vunpack.c.l.b16 %v525
    %v597 = vunpack.c.l.b16 %v526
    %v598 = vunpack.c.l.b16 %v527
    %v599 = vunpack.c.l.b16 %v528
    %v600 = vunpack.c.l.b16 %v529
    %v601 = vunpack.c.l.b16 %v530
    %v602 = vunpack.c.l.b16 %v531
    %v603 = vunpack.c.l.b16 %v532
    %v604 = vunpack.c.l.b16 %v533
    %v605 = vunpack.c.l.b16 %v534
    %v606 = vunpack.c.l.b16 %v535
    %v607 = vunpack.c.l.b16 %v536
    %v608 = vunpack.c.l.b16 %v537
    %v609 = vunpack.c.l.b16 %v538
    %v610 = vunpack.c.l.b16 %v539
    %v611 = vunpack.c.l.b16 %v540
    %v612 = vunpack.c.l.b16 %v541
    %v613 = vunpack.c.l.b16 %v542
    %v614 = vpack.c.b16 %v583, %v582
    %v615 = vpack.c.b16 %v585, %v584
    %v616 = vpack.c.b16 %v587, %v586
    %v617 = vpack.c.b16 %v589, %v588
    %v618 = vpack.c.b16 %v591, %v590
    %v619 = vpack.c.b16 %v593, %v592
    %v620 = vpack.c.b16 %v595, %v594
    %v621 = vpack.c.b16 %v597, %v596
    %v622 = vpack.c.b16 %v599, %v598
    %v623 = vpack.c.b16 %v601, %v600
    %v624 = vpack.c.b16 %v603, %v602
    %v625 = vpack.c.b16 %v605, %v604
    %v626 = vpack.c.b16 %v607, %v606
    %v627 = vpack.c.b16 %v609, %v608
    %v628 = vpack.c.b16 %v611, %v610
    %v629 = vpack.c.b16 %v613, %v612
    %646 = vmatprep.subr.bf16.mxu0 0
    %647 = vmatpush1.bf16.msra.mxu0 %v614
    %648 = vmatprep.subr.bf16.mxu0 0
    %649 = vmatpush1.bf16.msra.mxu0 %v615
    %650 = vmatprep.subr.bf16.mxu0 0
    %651 = vmatpush1.bf16.msra.mxu0 %v616
    %652 = vmatprep.subr.bf16.mxu0 0
    %653 = vmatpush1.bf16.msra.mxu0 %v617
    %654 = vmatprep.subr.bf16.mxu0 0
    %655 = vmatpush1.bf16.msra.mxu0 %v618
    %656 = vmatprep.subr.bf16.mxu0 0
    %657 = vmatpush1.bf16.msra.mxu0 %v619
    %658 = vmatprep.subr.bf16.mxu0 0
    %659 = vmatpush1.bf16.msra.mxu0 %v620
    %660 = vmatprep.subr.bf16.mxu0 0
    %661 = vmatpush1.bf16.msra.mxu0 %v621
    %662 = vmatprep.subr.bf16.mxu0 0
    %663 = vmatpush1.bf16.msra.mxu0 %v622
    %664 = vmatprep.subr.bf16.mxu0 0
    %665 = vmatpush1.bf16.msra.mxu0 %v623
    %666 = vmatprep.subr.bf16.mxu0 0
    %667 = vmatpush1.bf16.msra.mxu0 %v624
    %668 = vmatprep.subr.bf16.mxu0 0
    %669 = vmatpush1.bf16.msra.mxu0 %v625
    %670 = vmatprep.subr.bf16.mxu0 0
    %671 = vmatpush1.bf16.msra.mxu0 %v626
    %672 = vmatprep.subr.bf16.mxu0 0
    %673 = vmatpush1.bf16.msra.mxu0 %v627
    %674 = vmatprep.subr.bf16.mxu0 0
    %675 = vmatpush1.bf16.msra.mxu0 %v628
    %676 = vmatprep.subr.bf16.mxu0 0
    %677 = vmatpush1.bf16.msra.mxu0 %v629
    %678 = vmatprep.mubr.bf16.mxu0 %v510
    %679 = vmatmul.mubr.bf16.gmra.mrb[0].mxu0 %v509
    %v680 = vpop.f32.mrb[0].mxu0
    %v681 = vadd.f32 %v548, %v680
    %v682 = vpop.f32.mrb[0].mxu0
    %v683 = vpop.f32.mrb[0].mxu0
    %v684 = vadd.f32 %v548, %v683
    %v685 = vpop.f32.mrb[0].mxu0
    %686 = vdwg.mxu0
    %v687 = vmin.f32 %v681, 0.0
    %v688 = vmin.f32 %v684, 0.0
    %v689 = vmul.f32 %v687, 1.442695
    %v690 = vpow.pop %v689
    %v691 = vmul.f32 %v688, 1.442695
    %v692 = vpow.pop %v691
    %v693 = vsub.f32 %v690, 1.0
    %v694 = vsub.f32 %v692, 1.0
    %v695 = vmul.f32 %v693, 1.6732632
    %v696 = vmul.f32 %v694, 1.6732632
    %vm697 = vcmp.gt.f32.partialorder %v681, 0.0
    %vm698 = vcmp.gt.f32.partialorder %v684, 0.0
    %v699 = vsel %vm697, %v681, %v695
    %v700 = vsel %vm698, %v684, %v696
    %v701 = vmul.f32 %v699, 1.050701
    %v702 = vmul.f32 %v700, 1.050701
    %vm703 = vcmask 261120
    %704 = vst.msk [vmem:[#allocation5] sm:$0xff] %vm703, %v701
    %705 = vst.msk [vmem:[#allocation5 + $0x8] sm:$0xff] %vm703, %v702
    // Predicated region
    $region34: #{tpu_custom_call.1} parent=1 // pred_check
      _
    $region35: #{tpu_custom_call.1} parent=1 // pred_check_branch
      %707 = sbr.rel (0) target = $region37
    $region36: #{tpu_custom_call.1} parent=1 // pred_region
      %s709 = ssub.s32 256, 256
      %710 = vsyncadd [#allocation4], %s709
      %s711 = sshll.u32 [#allocation5], 4
      %s712 = int_to_ptr.vmem [resolvable:$true] %s711
      %717 = dma.vmem_to_hbm [thread:$0]  %s712, 256, %s7, [#allocation4], 128, 128, 8
    $region37: #{tpu_custom_call.1} parent=1 // pred_fallthru
      _
    // Predicated region
    $region38: #{tpu_custom_call.1} parent=1 // pred_check
      _
    $region39: #{tpu_custom_call.1} parent=1 // pred_check_branch
      %719 = sbr.rel (0) target = $region41
    $region40: #{tpu_custom_call.1} parent=1 // pred_region
      %720 = dma.done [#allocation4], 256
    $region41: #{tpu_custom_call.1} parent=1 // pred_fallthru
      _
    %721 = vsyncpa [#allocation3], 1
    %722 = vsyncpa [#allocation4], 1

</llo_original>
